<compile_context>
chip_gen: v5e
topology: v5e:2x2
jax: 0.10.0
libtpu: 0.0.40
codegen_flags: <defaults>
</compile_context>

<pallas_src>
import functools

import jax
import jax.numpy as jnp
from jax import lax
from jax.experimental import pallas as pl
from jax.experimental.pallas import tpu as pltpu


def _noisy_topk_kernel(x_ref, w_ref, b_ref, out_ref, idx_ref, *, top_k):
    # x: (tm, D) natural row-major tile.  w: (D, E) fused weight.  b: (E, 1).
    # Matmul in natural orientation (no transpose of the big x tile), then
    # transpose only the tiny (tm, E) result so the per-token work below is
    # lane-dense (tokens on the 128-lane axis, experts on sublanes).
    logits = jnp.dot(x_ref[...], w_ref[...],
                     preferred_element_type=jnp.float32)          # (tm, E)
    noisy = logits.T + b_ref[...]                                 # (E, tm)

    E, tm = noisy.shape
    row = lax.broadcasted_iota(jnp.int32, (E, tm), 0)             # expert id / sublane
    neg_inf = jnp.float32(-jnp.inf)

    # Iterative top-k along the small, static expert axis: argmax + mask-out.
    work = noisy
    m0 = None
    idx_rows = []
    for t in range(top_k):
        m = jnp.max(work, axis=0, keepdims=True)                  # (1, tm)
        if m0 is None:
            m0 = m                                                # global max for softmax
        hit = work == m
        # Lowest expert index among equal maxima (torch.topk tie order is
        # backend-dependent; values/probabilities are identical either way).
        idx = jnp.min(jnp.where(hit, row, E), axis=0, keepdims=True)   # (1, tm) i32
        idx_rows.append(idx)
        work = jnp.where(row == idx, neg_inf, work)

    # Single coalesced (top_k, tm) store instead of top_k masked sub-stores.
    idx_ref[...] = jnp.concatenate(idx_rows, axis=0)

    # Softmax over the sparse logits: non-top-k experts contribute exp(-inf)=0.
    # Selected positions are exactly where `work` was knocked down to -inf.
    p = jnp.where(work == neg_inf, jnp.exp(noisy - m0), jnp.float32(0.0))
    denom = jnp.sum(p, axis=0, keepdims=True)                     # (1, tm)
    # Exact divide kept (approx=True is a free EUP move but loosens accuracy
    # slightly; negligible either way in this HBM-bound regime).
    out_ref[...] = p * pl.reciprocal(denom, approx=False)


def _choose_tm(M, D, itemsize):
    """Token tile: largest multiple of 128 whose double-buffered x tile fits a
    conservative VMEM budget (safe for v5e's 16 MiB scoped default and v7x's
    64 MiB physical VMEM), with >= 2 grid steps when there is enough work so
    the 'parallel' grid axis can feed both TensorCores."""
    if M <= 256:
        return M                       # single block; block == full dim is legal
    x_budget = 12 << 20                # bytes for the 2x-buffered x tile
    tm = (x_budget // (2 * max(D, 1) * itemsize)) // 128 * 128
    tm = max(128, min(tm, 2048))       # small D -> big tiles; large D -> VMEM-safe
    # Guarantee >= 2 grid steps for megacore sharding on v7x.
    tm = min(tm, max(128, (M // 2) // 128 * 128))
    return tm


def noisy_topk(x, w_lin, b_lin, w_noise, b_noise, top_k, *, tm=None):
    """x: (B, T, n_embed).  w_*: (n_embed, n_experts).  b_*: (n_experts,)."""
    B, T, D = x.shape
    E = w_lin.shape[1]
    M = B * T

    # Fuse the two linear layers: the module only consumes logits + noise_logits,
    # so noisy = x @ (W1 + W2) + (b1 + b2).  Weight matches x dtype (bf16-friendly);
    # bias stays f32 and is added after the f32-accumulated matmul.
    w_sum = (w_lin + w_noise).astype(x.dtype)                     # (D, E)
    b_sum = (b_lin + b_noise).astype(jnp.float32).reshape(E, 1)   # (E, 1)

    x2d = x.reshape(M, D)              # natural layout; no host-side transpose

    if tm is None:
        tm = _choose_tm(M, D, x2d.dtype.itemsize)
    Mp = ((M + tm - 1) // tm) * tm
    if Mp != M:
        x2d = jnp.pad(x2d, ((0, Mp - M), (0, 0)))

    kernel = functools.partial(_noisy_topk_kernel, top_k=top_k)

    router_t, idx_t = pl.pallas_call(
        kernel,
        out_shape=(
            jax.ShapeDtypeStruct((E, Mp), jnp.float32),
            jax.ShapeDtypeStruct((top_k, Mp), jnp.int32),
        ),
        grid_spec=pltpu.PrefetchScalarGridSpec(
            num_scalar_prefetch=0,
            grid=(Mp // tm,),
            in_specs=[
                pl.BlockSpec((tm, D), lambda i: (i, 0)),      # contiguous x row tile
                pl.BlockSpec((D, E), lambda i: (0, 0)),       # fused weight (constant)
                pl.BlockSpec((E, 1), lambda i: (0, 0)),       # fused bias (constant)
            ],
            out_specs=[
                pl.BlockSpec((E, tm), lambda i: (0, i)),      # router output^T
                pl.BlockSpec((top_k, tm), lambda i: (0, i)),  # indices^T
            ],
        ),
        compiler_params=pltpu.CompilerParams(
            dimension_semantics=("parallel",),
            vmem_limit_bytes=32 << 20,   # explicit: safe on v5e/v6e/v7x defaults
        ),
    )(x2d, w_sum, b_sum)

    # Tiny (E, M)/(top_k, M) output transposes back to module layout (E << D,
    # so this is a negligible fraction of the x traffic).
    router = router_t[:, :M].T.reshape(B, T, E)
    topk_idx = idx_t[:, :M].T.reshape(B, T, top_k)
    return router, topk_idx


def _reference(x, w_lin, b_lin, w_noise, b_noise, top_k):
    # Matches the PyTorch module exactly: noisy_logits = logits + noise_logits
    #   = x @ W1 + b1 + x @ W2 + b2 = x @ (W1 + W2) + (b1 + b2).
    noisy = x @ (w_lin + w_noise) + (b_lin + b_noise)
    _, topk_idx = lax.top_k(noisy, top_k)
    one_hot = jax.nn.one_hot(topk_idx, noisy.shape[-1], dtype=jnp.float32)  # (B,T,k,E)
    mask = jnp.sum(one_hot, axis=-2) > 0
    sparse = jnp.where(mask, noisy, -jnp.inf)
    return jax.nn.softmax(sparse, axis=-1), topk_idx


if __name__ == "__main__":
    # Small, module-consistent shapes: batch=2, seq=8, n_embed=32, n_experts=8, top_k=2
    B, T, D, E, K = 2, 8, 32, 8, 2
    key = jax.random.PRNGKey(0)
    kx, k1, k2, k3, k4 = jax.random.split(key, 5)

    x = jax.random.normal(kx, (B, T, D), dtype=jnp.float32)
    # Deterministic "Linear" parameters, stored as (in_features, out_features).
    w_lin = jax.random.normal(k1, (D, E), dtype=jnp.float32) * (1.0 / jnp.sqrt(D))
    b_lin = jax.random.normal(k2, (E,), dtype=jnp.float32) * 0.1
    w_noise = jax.random.normal(k3, (D, E), dtype=jnp.float32) * (1.0 / jnp.sqrt(D))
    b_noise = jax.random.normal(k4, (E,), dtype=jnp.float32) * 0.1

    router_out, topk_idx = noisy_topk(x, w_lin, b_lin, w_noise, b_noise, K)
    jax.block_until_ready(router_out)
    jax.block_until_ready(topk_idx)

    # Sanity check against a plain-JAX reference.
    ref_router, ref_idx = _reference(x, w_lin, b_lin, w_noise, b_noise, K)
    assert router_out.shape == (B, T, E) and topk_idx.shape == (B, T, K)
    assert jnp.allclose(router_out, ref_router, atol=1e-4, rtol=1e-4), "router mismatch"
    assert jnp.array_equal(topk_idx, ref_idx), "index mismatch"

    print("KERNEL_OK")
</pallas_src>

<mosaic_0001>
module attributes {stable_mosaic.version = 11 : i64} {
  func.func @_noisy_topk_kernel(%arg0: i32, %arg1: memref<16x32xf32, #tpu.memory_space<vmem>>, %arg2: memref<32x8xf32, #tpu.memory_space<vmem>>, %arg3: memref<8x1xf32, #tpu.memory_space<vmem>>, %arg4: memref<8x16xf32, #tpu.memory_space<vmem>>, %arg5: memref<2x16xi32, #tpu.memory_space<vmem>>) attributes {dimension_semantics = [#tpu.dimension_semantics<parallel>], iteration_bounds = array<i64: 1>, scalar_prefetch = 0 : i64, scratch_operands = 0 : i64, tpu.core_type = #tpu.core_type<tc>, window_params = [{transform_indices = @transform_0, window_bounds = array<i64: 16, 32>}, {pipeline_mode = #tpu.pipeline_mode<synchronous>, transform_indices = @transform_1, window_bounds = array<i64: 32, 8>}, {pipeline_mode = #tpu.pipeline_mode<synchronous>, transform_indices = @transform_2, window_bounds = array<i64: 8, 1>}, {transform_indices = @transform_3, window_bounds = array<i64: 8, 16>}, {transform_indices = @transform_4, window_bounds = array<i64: 2, 16>}]} {
    %c0 = arith.constant 0 : index
    %c0_0 = arith.constant 0 : index
    %0 = vector.load %arg1[%c0, %c0_0] : memref<16x32xf32, #tpu.memory_space<vmem>>, vector<16x32xf32>
    %c0_1 = arith.constant 0 : index
    %c0_2 = arith.constant 0 : index
    %1 = vector.load %arg2[%c0_1, %c0_2] : memref<32x8xf32, #tpu.memory_space<vmem>>, vector<32x8xf32>
    %cst = arith.constant dense<0.000000e+00> : vector<16x8xf32>
    %2 = tpu.matmul %0, %1, %cst {dimension_numbers = #tpu.dot_dimension_numbers<[1], [0], [0], [1], [0, 0, 1, 1], [], []>} : vector<16x32xf32>, vector<32x8xf32>, vector<16x8xf32> -> vector<16x8xf32>
    %3 = tpu.transpose %2, [1, 0] : vector<16x8xf32> -> vector<8x16xf32>
    %c0_3 = arith.constant 0 : index
    %c0_4 = arith.constant 0 : index
    %4 = vector.load %arg3[%c0_3, %c0_4] : memref<8x1xf32, #tpu.memory_space<vmem>>, vector<8x1xf32>
    %5 = vector.broadcast %4 : vector<8x1xf32> to vector<8x16xf32>
    %6 = arith.addf %3, %5 : vector<8x16xf32>
    %7 = tpu.iota {dimensions = array<i32: 0>} : vector<8x16xi32>
    %cst_5 = arith.constant dense<0xFF800000> : vector<16xf32>
    %8 = vector.multi_reduction <maximumf>, %6, %cst_5 [0] : vector<8x16xf32> to vector<16xf32>
    %9 = vector.shape_cast %8 : vector<16xf32> to vector<1x16xf32>
    %10 = vector.broadcast %9 : vector<1x16xf32> to vector<8x16xf32>
    %11 = arith.cmpf oeq, %6, %10 : vector<8x16xf32>
    %c8_i32 = arith.constant 8 : i32
    %12 = vector.broadcast %c8_i32 : i32 to vector<8x16xi32>
    %13 = arith.select %11, %7, %12 : vector<8x16xi1>, vector<8x16xi32>
    %cst_6 = arith.constant dense<2147483647> : vector<16xi32>
    %14 = vector.multi_reduction <minsi>, %13, %cst_6 [0] : vector<8x16xi32> to vector<16xi32>
    %15 = vector.shape_cast %14 : vector<16xi32> to vector<1x16xi32>
    %16 = vector.broadcast %15 : vector<1x16xi32> to vector<8x16xi32>
    %17 = arith.cmpi eq, %7, %16 : vector<8x16xi32>
    %cst_7 = arith.constant 0xFF800000 : f32
    %18 = vector.broadcast %cst_7 : f32 to vector<8x16xf32>
    %19 = arith.select %17, %18, %6 : vector<8x16xi1>, vector<8x16xf32>
    %cst_8 = arith.constant dense<0xFF800000> : vector<16xf32>
    %20 = vector.multi_reduction <maximumf>, %19, %cst_8 [0] : vector<8x16xf32> to vector<16xf32>
    %21 = vector.shape_cast %20 : vector<16xf32> to vector<1x16xf32>
    %22 = vector.broadcast %21 : vector<1x16xf32> to vector<8x16xf32>
    %23 = arith.cmpf oeq, %19, %22 : vector<8x16xf32>
    %c8_i32_9 = arith.constant 8 : i32
    %24 = vector.broadcast %c8_i32_9 : i32 to vector<8x16xi32>
    %25 = arith.select %23, %7, %24 : vector<8x16xi1>, vector<8x16xi32>
    %cst_10 = arith.constant dense<2147483647> : vector<16xi32>
    %26 = vector.multi_reduction <minsi>, %25, %cst_10 [0] : vector<8x16xi32> to vector<16xi32>
    %27 = vector.shape_cast %26 : vector<16xi32> to vector<1x16xi32>
    %28 = vector.broadcast %27 : vector<1x16xi32> to vector<8x16xi32>
    %29 = arith.cmpi eq, %7, %28 : vector<8x16xi32>
    %cst_11 = arith.constant 0xFF800000 : f32
    %30 = vector.broadcast %cst_11 : f32 to vector<8x16xf32>
    %31 = arith.select %29, %30, %19 : vector<8x16xi1>, vector<8x16xf32>
    %32 = tpu.concatenate %15, %27 in 0 : vector<1x16xi32>, vector<1x16xi32> -> vector<2x16xi32>
    %c0_12 = arith.constant 0 : index
    %c0_13 = arith.constant 0 : index
    %33 = vector.load %arg5[%c0_12, %c0_13] : memref<2x16xi32, #tpu.memory_space<vmem>>, vector<2x16xi32>
    tpu.vector_store %arg5[%c0_12, %c0_13], %32 {strides = array<i32>} : memref<2x16xi32, #tpu.memory_space<vmem>>, vector<2x16xi32>,
    %cst_14 = arith.constant 0xFF800000 : f32
    %34 = vector.broadcast %cst_14 : f32 to vector<8x16xf32>
    %35 = arith.cmpf oeq, %31, %34 : vector<8x16xf32>
    %36 = vector.broadcast %9 : vector<1x16xf32> to vector<8x16xf32>
    %37 = arith.subf %6, %36 : vector<8x16xf32>
    %38 = math.exp %37 : vector<8x16xf32>
    %cst_15 = arith.constant 0.000000e+00 : f32
    %39 = vector.broadcast %cst_15 : f32 to vector<8x16xf32>
    %40 = arith.select %35, %38, %39 : vector<8x16xi1>, vector<8x16xf32>
    %cst_16 = arith.constant dense<0.000000e+00> : vector<16xf32>
    %41 = vector.multi_reduction <add>, %40, %cst_16 [0] : vector<8x16xf32> to vector<16xf32>
    %42 = vector.shape_cast %41 : vector<16xf32> to vector<1x16xf32>
    %43 = tpu.reciprocal %42 : vector<1x16xf32> -> vector<1x16xf32>
    %44 = vector.broadcast %43 : vector<1x16xf32> to vector<8x16xf32>
    %45 = arith.mulf %40, %44 : vector<8x16xf32>
    %c0_17 = arith.constant 0 : index
    %c0_18 = arith.constant 0 : index
    %46 = vector.load %arg4[%c0_17, %c0_18] : memref<8x16xf32, #tpu.memory_space<vmem>>, vector<8x16xf32>
    tpu.vector_store %arg4[%c0_17, %c0_18], %45 {strides = array<i32>} : memref<8x16xf32, #tpu.memory_space<vmem>>, vector<8x16xf32>,
    return
  }
  func.func @transform_0(%arg0: i32) -> (i32, i32) {
    %c0_i32 = arith.constant 0 : i32
    %c0_i32_0 = arith.constant 0 : i32
    return %arg0, %c0_i32 : i32, i32
  }
  func.func @transform_1(%arg0: i32) -> (i32, i32) {
    %c0_i32 = arith.constant 0 : i32
    %c0_i32_0 = arith.constant 0 : i32
    %c0_i32_1 = arith.constant 0 : i32
    return %c0_i32, %c0_i32_0 : i32, i32
  }
  func.func @transform_2(%arg0: i32) -> (i32, i32) {
    %c0_i32 = arith.constant 0 : i32
    %c0_i32_0 = arith.constant 0 : i32
    %c0_i32_1 = arith.constant 0 : i32
    return %c0_i32, %c0_i32_0 : i32, i32
  }
  func.func @transform_3(%arg0: i32) -> (i32, i32) {
    %c0_i32 = arith.constant 0 : i32
    %c0_i32_0 = arith.constant 0 : i32
    return %c0_i32, %arg0 : i32, i32
  }
  func.func @transform_4(%arg0: i32) -> (i32, i32) {
    %c0_i32 = arith.constant 0 : i32
    %c0_i32_0 = arith.constant 0 : i32
    return %c0_i32, %arg0 : i32, i32
  }
}

</mosaic_0001>

<llo_original>
// kernel: tpu_custom_call.1
$region0: #{tpu_custom_call.1}
  #allocation0 [shape = 'u32[]', space=smem, size = 0x4, offset = 0x4, fixed_abs, tag = 'smem constant byte address 0x4 - core index']
  #allocation1 [shape = 'u32[72,128]{1,0:T(1,128)}', space=vmem, size = 0x9000, scoped, tag = 'internal scratch']
  %s0 = inlined_call_operand.vmem [shape: f32[16,32], index: 0, kind: input, shape index: {}]
  %s1 = inlined_call_operand.vmem [shape: f32[32,8], index: 1, kind: input, shape index: {}]
  %s2 = inlined_call_operand.vmem [shape: f32[8,1], index: 2, kind: input, shape index: {}]
  %s3 = inlined_call_operand.hbm [shape: f32[8,16], index: 3, kind: output, shape index: {0}]
  %s4 = inlined_call_operand.hbm [shape: s32[2,16], index: 4, kind: output, shape index: {1}]
  %5 = xla_tuple %s3, %s4
  %s6 = sld [smem:[#allocation0]]
  $region30: #{tpu_custom_call.1} parent=0
    _
  %s8 = ssub.s32 1, %s6
  %s9 = scalar_select 0, %s8, %s6
  $region1: #{tpu_custom_call.1} parent=0
    #allocation2 [shape = 'u8[4096]{0}', space=vmem, size = 0x1000, scoped, tag = 'output window, operand 0, single buffered']
    #allocation3 [shape = 's32[1]{0}', space=sflag, size = 0x4, scoped, tag = 'scoped memory for tpu_custom_call.1']
    #allocation4 [shape = 'u8[1024]{0}', space=vmem, size = 0x400, scoped, tag = 'output window, operand 1, single buffered']
    #allocation5 [shape = 's32[1]{0}', space=sflag, size = 0x4, scoped, tag = 'scoped memory for tpu_custom_call.1']
    %10 = vsyncpa [#allocation3], 0
    %11 = vsyncpa [#allocation5], 0
    // Predicated region
    $region2: #{tpu_custom_call.1} parent=1 // pred_check
      _
    $region3: #{tpu_custom_call.1} parent=1 // pred_check_branch
      %13 = sbr.rel (0) target = $region5
    $region4: #{tpu_custom_call.1} parent=1 // pred_region
      _
    $region5: #{tpu_custom_call.1} parent=1 // pred_fallthru
      _
    // Predicated region
    $region6: #{tpu_custom_call.1} parent=1 // pred_check
      _
    $region7: #{tpu_custom_call.1} parent=1 // pred_check_branch
      %15 = sbr.rel (0) target = $region9
    $region8: #{tpu_custom_call.1} parent=1 // pred_region
      _
    $region9: #{tpu_custom_call.1} parent=1 // pred_fallthru
      _
    // Predicated region
    $region10: #{tpu_custom_call.1} parent=1 // pred_check
      _
    $region11: #{tpu_custom_call.1} parent=1 // pred_check_branch
      %17 = sbr.rel (0) target = $region13
    $region12: #{tpu_custom_call.1} parent=1 // pred_region
      _
    $region13: #{tpu_custom_call.1} parent=1 // pred_fallthru
      _
    %v18 = vld [vmem:[%s0] sm:$0xff]
    %v19 = vld [vmem:[%s0 + $0x8] sm:$0xff]
    %v20 = vld [vmem:[%s1] sm:$0xff]
    %v21 = vld [vmem:[%s1 + $0x8] sm:$0xff]
    %v22 = vld [vmem:[%s1 + $0x10] sm:$0xff]
    %v23 = vld [vmem:[%s1 + $0x18] sm:$0xff]
    %vm24 = vcmask 261120
    %v26 = vsel %vm24, %v18, 0
    %v29 = vsel %vm24, %v19, 0
    %31 = vmatpush.msra.mxu0 0.0
    %32 = vmatpush.msra.mxu0 0.0
    %33 = vmatpush.msra.mxu0 0.0
    %34 = vmatpush.msra.mxu0 0.0
    %35 = vmatpush.msra.mxu0 0.0
    %36 = vmatpush.msra.mxu0 0.0
    %37 = vmatpush.msra.mxu0 0.0
    %38 = vmatpush.msra.mxu0 0.0
    %39 = vmatpush.msra.mxu0 0.0
    %40 = vmatpush.msra.mxu0 0.0
    %41 = vmatpush.msra.mxu0 0.0
    %42 = vmatpush.msra.mxu0 0.0
    %43 = vmatpush.msra.mxu0 %v23
    %44 = vmatpush.msra.mxu0 %v22
    %45 = vmatpush.msra.mxu0 %v21
    %46 = vmatpush.msra.mxu0 %v20
    %47 = vmatmul.f32.gmra.mxu0 %v26
    %v48 = vpop.f32.mrf.mxu0
    %v49 = vadd.f32 0.0, %v48
    %50 = vmatmul.f32.gmra.mxu0 %v29
    %v51 = vpop.f32.mrf.mxu0
    %v52 = vadd.f32 0.0, %v51
    %53 = vdwg.mxu0
    %54 = vxpose.xlu0.b32.start [1/16] %v49, 128
    %55 = vxpose.xlu0.b32.cont [2/16] %v52, 128
    %56 = vxpose.xlu0.b32.cont [3/16] 0.0, 128
    %57 = vxpose.xlu0.b32.cont [4/16] 0.0, 128
    %58 = vxpose.xlu0.b32.cont [5/16] 0.0, 128
    %59 = vxpose.xlu0.b32.cont [6/16] 0.0, 128
    %60 = vxpose.xlu0.b32.cont [7/16] 0.0, 128
    %61 = vxpose.xlu0.b32.cont [8/16] 0.0, 128
    %62 = vxpose.xlu0.b32.cont [9/16] 0.0, 128
    %63 = vxpose.xlu0.b32.cont [10/16] 0.0, 128
    %64 = vxpose.xlu0.b32.cont [11/16] 0.0, 128
    %65 = vxpose.xlu0.b32.cont [12/16] 0.0, 128
    %66 = vxpose.xlu0.b32.cont [13/16] 0.0, 128
    %67 = vxpose.xlu0.b32.cont [14/16] 0.0, 128
    %68 = vxpose.xlu0.b32.cont [15/16] 0.0, 128
    %69 = vxpose.xlu0.b32.end [16/16] 0.0, 128
    %v70 = vpop.trf.xlu0
    %v71 = vpop.trf.xlu0
    %v72 = vpop.trf.xlu0
    %v73 = vpop.trf.xlu0
    %v74 = vpop.trf.xlu0
    %v75 = vpop.trf.xlu0
    %v76 = vpop.trf.xlu0
    %v77 = vpop.trf.xlu0
    %v78 = vpop.trf.xlu0
    %v79 = vpop.trf.xlu0
    %v80 = vpop.trf.xlu0
    %v81 = vpop.trf.xlu0
    %v82 = vpop.trf.xlu0
    %v83 = vpop.trf.xlu0
    %v84 = vpop.trf.xlu0
    %v85 = vpop.trf.xlu0
    %v86 = vld [vmem:[%s2] sm:$0xff]
    %88 = vset.pattern.permute.xlu0 0
    %89 = vperm.xlu0 %88, %v86
    %v90 = vpop.permute.xlu0 %89
    %v92 = vadd.f32 %v70, %v90
    %v93 = vlaneseq
    %v94 = vshrl.u32 %v93, 7
    %vm95 = vcmask 130048
    %v96 = vsel %vm95, %v92, -inf
    %v97 = vrot.slane %v96, 4
    %v98 = vmax.f32 %v96, %v97
    %v99 = vrot.slane %v98, 2
    %v100 = vmax.f32 %v98, %v99
    %v101 = vrot.slane %v100, 1
    %v102 = vmax.f32 %v100, %v101
    %vm103 = vcmp.eq.f32.partialorder %v92, %v102
    %v104 = vsel %vm103, %v94, 8
    %v105 = vsel %vm95, %v104, 2147483647
    %v106 = vrot.slane %v105, 4
    %vm107 = vcmp.lt.s32.totalorder %v105, %v106
    %v108 = vsel %vm107, %v105, %v106
    %v109 = vrot.slane %v108, 2
    %vm110 = vcmp.lt.s32.totalorder %v108, %v109
    %v111 = vsel %vm110, %v108, %v109
    %v112 = vrot.slane %v111, 1
    %vm113 = vcmp.lt.s32.totalorder %v111, %v112
    %v114 = vsel %vm113, %v111, %v112
    %vm115 = vcmp.eq.s32.totalorder %v94, %v114
    %v116 = vsel %vm115, -inf, %v92
    %v117 = vsel %vm95, %v116, -inf
    %v118 = vrot.slane %v117, 4
    %v119 = vmax.f32 %v117, %v118
    %v120 = vrot.slane %v119, 2
    %v121 = vmax.f32 %v119, %v120
    %v122 = vrot.slane %v121, 1
    %v123 = vmax.f32 %v121, %v122
    %vm124 = vcmp.eq.f32.partialorder %v116, %v123
    %v125 = vsel %vm124, %v94, 8
    %v126 = vsel %vm95, %v125, 2147483647
    %v127 = vrot.slane %v126, 4
    %vm128 = vcmp.lt.s32.totalorder %v126, %v127
    %v129 = vsel %vm128, %v126, %v127
    %v130 = vrot.slane %v129, 2
    %vm131 = vcmp.lt.s32.totalorder %v129, %v130
    %v132 = vsel %vm131, %v129, %v130
    %v133 = vrot.slane %v132, 1
    %vm134 = vcmp.lt.s32.totalorder %v132, %v133
    %v135 = vsel %vm134, %v132, %v133
    %vm136 = vcmp.eq.s32.totalorder %v94, %v135
    %v137 = vsel %vm136, -inf, %v116
    %vm138 = vcmask 1040384
    %v139 = vsel %vm138, %v114, %v135
    %vm140 = vcmask 123904
    %141 = vst.msk [vmem:[#allocation4] sm:$0x3] %vm140, %v139
    %vm142 = vcmp.eq.f32.partialorder %v137, -inf
    %v143 = vsub.f32 %v92, %v102
    %v144 = vmul.f32 %v143, 1.442695
    %v145 = vpow.pop %v144
    %v146 = vsel %vm142, %v145, 0.0
    %v147 = vsel %vm95, %v146, 0.0
    %v148 = vrot.slane %v147, 4
    %v149 = vadd.f32 %v147, %v148
    %v150 = vrot.slane %v149, 2
    %v151 = vadd.f32 %v149, %v150
    %v152 = vrot.slane %v151, 1
    %v153 = vadd.f32 %v151, %v152
    %v154 = vrcp.pop %v153
    %v155 = vmul.f32 %v153, %v154
    %v156 = vsub.f32 1.0, %v155
    %v157 = vmul.f32 %v154, %v156
    %v158 = vadd.f32 %v154, %v157
    %vm159 = vweird.f32 %v153
    %vm160 = vweird.f32 %v154
    %vm161 = vmor %vm159, %vm160
    %v162 = vsel %vm161, %v154, %v158
    %v163 = vand.u32 2147483647, %v153
    %vm164 = vcmp.eq.f32.partialorder %v163, 8.507059e+37
    %v165 = vand.u32 %v153, 2147483648
    %v166 = vor.u32 1.1754944e-38, %v165
    %v167 = vsel %vm164, %v166, %v162
    %v168 = vmul.f32 %v146, %v167
    %169 = vst.msk [vmem:[#allocation2] sm:$0xff] %vm95, %v168
    // Predicated region
    $region14: #{tpu_custom_call.1} parent=1 // pred_check
      _
    $region15: #{tpu_custom_call.1} parent=1 // pred_check_branch
      %171 = sbr.rel (0) target = $region17
    $region16: #{tpu_custom_call.1} parent=1 // pred_region
      %173 = vsyncadd [#allocation3], 0
      %s175 = sshll.u32 [#allocation2], 4
      %s176 = int_to_ptr.vmem [resolvable:$true] %s175
      %s177 = sshll.u32 %s3, 4
      %s178 = int_to_ptr.hbm [resolvable:$true] %s177
      %180 = dma.vmem_to_hbm [thread:$0]  %s176, 128, %s178, [#allocation3]
    $region17: #{tpu_custom_call.1} parent=1 // pred_fallthru
      _
    // Predicated region
    $region18: #{tpu_custom_call.1} parent=1 // pred_check
      _
    $region19: #{tpu_custom_call.1} parent=1 // pred_check_branch
      %182 = sbr.rel (0) target = $region21
    $region20: #{tpu_custom_call.1} parent=1 // pred_region
      %184 = vsyncadd [#allocation5], 0
      %s186 = sshll.u32 [#allocation4], 4
      %s187 = int_to_ptr.vmem [resolvable:$true] %s186
      %s188 = sshll.u32 %s4, 4
      %s189 = int_to_ptr.hbm [resolvable:$true] %s188
      %191 = dma.vmem_to_hbm [thread:$0]  %s187, 32, %s189, [#allocation5]
    $region21: #{tpu_custom_call.1} parent=1 // pred_fallthru
      _
    // Predicated region
    $region22: #{tpu_custom_call.1} parent=1 // pred_check
      _
    $region23: #{tpu_custom_call.1} parent=1 // pred_check_branch
      %193 = sbr.rel (0) target = $region25
    $region24: #{tpu_custom_call.1} parent=1 // pred_region
      %195 = dma.done [#allocation3], 128
    $region25: #{tpu_custom_call.1} parent=1 // pred_fallthru
      _
    // Predicated region
    $region26: #{tpu_custom_call.1} parent=1 // pred_check
      _
    $region27: #{tpu_custom_call.1} parent=1 // pred_check_branch
      %197 = sbr.rel (0) target = $region29
    $region28: #{tpu_custom_call.1} parent=1 // pred_region
      %199 = dma.done [#allocation5], 32
    $region29: #{tpu_custom_call.1} parent=1 // pred_fallthru
      _
    %200 = vsyncpa [#allocation3], 1
    %201 = vsyncpa [#allocation5], 1

</llo_original>
